<compile_context>
chip_gen: v5e
topology: v5e:2x2
jax: 0.10.0
libtpu: 0.0.40
codegen_flags: <defaults>
</compile_context>

<pallas_src>
import jax
import jax.numpy as jnp
from jax.experimental import pallas as pl
from jax.experimental.pallas import tpu as pltpu


def _mlp_kernel(x_ref, w1_ref, b1_ref, w2_ref, b2_ref, o_ref):
    # One row tile (tm, C_in) -> (tm, C_out); both matmuls + GELU fused.
    # Operands are fed to the MXU in their native dtype; accumulate in f32.
    h = jnp.dot(x_ref[...], w1_ref[...], preferred_element_type=jnp.float32)
    h = h + b1_ref[...].astype(jnp.float32)
    # Exact (erf-based) GELU == PyTorch nn.GELU() default.
    h = 0.5 * h * (1.0 + jax.lax.erf(h * jnp.float32(0.7071067811865476)))
    y = jnp.dot(h.astype(w2_ref.dtype), w2_ref[...],
                preferred_element_type=jnp.float32)
    y = y + b2_ref[...].astype(jnp.float32)
    # Dropout with p=0.0 is the identity: nothing to do.
    o_ref[...] = y.astype(o_ref.dtype)


def _round_up(n, m):
    return ((n + m - 1) // m) * m


def mlp_pallas(x, w1, b1, w2, b2, *, tm=512):
    """Fused MLP forward: y = fc2(GELU(fc1(x))).

    x: (B, L, C_in); w1: (C_in, H); b1: (H,); w2: (H, C_out); b2: (C_out,).
    Weights may be float32 or bfloat16 (bf16 recommended on v6e/v7x).
    """
    B, L, C_in = x.shape
    H = w1.shape[1]
    C_out = w2.shape[1]
    M = B * L

    # Large MXU-friendly row tile; shrink for tiny problems so we do not pad a
    # handful of tokens all the way up to 512 rows.
    tm_eff = min(tm, _round_up(M, 128))
    M_pad = _round_up(M, tm_eff)

    x2d = x.reshape(M, C_in)
    if M_pad != M:
        x2d = jnp.pad(x2d, ((0, M_pad - M), (0, 0)))

    b1_2d = b1.reshape(1, H)
    b2_2d = b2.reshape(1, C_out)

    cost = pl.CostEstimate(
        flops=2 * M_pad * (C_in * H + H * C_out),
        transcendentals=M_pad * H,
        bytes_accessed=(x2d.size * x2d.dtype.itemsize
                        + w1.size * w1.dtype.itemsize
                        + b1.size * b1.dtype.itemsize
                        + w2.size * w2.dtype.itemsize
                        + b2.size * b2.dtype.itemsize
                        + M_pad * C_out * x.dtype.itemsize),
    )

    # TODO(synk): for v7x (64 MiB VMEM) with very large hidden dims, store the
    # weights in bf16 and/or add a hidden-dim grid axis with an f32 accumulator
    # so full-weight residency fits; unnecessary at ViT-Base-class sizes.
    out2d = pl.pallas_call(
        _mlp_kernel,
        out_shape=jax.ShapeDtypeStruct((M_pad, C_out), x.dtype),
        grid_spec=pltpu.PrefetchScalarGridSpec(
            num_scalar_prefetch=0,
            grid=(M_pad // tm_eff,),
            in_specs=[
                pl.BlockSpec((tm_eff, C_in), lambda i: (i, 0)),  # x row tile
                pl.BlockSpec((C_in, H), lambda i: (0, 0)),       # full W1 (resident)
                pl.BlockSpec((1, H), lambda i: (0, 0)),          # b1
                pl.BlockSpec((H, C_out), lambda i: (0, 0)),      # full W2 (resident)
                pl.BlockSpec((1, C_out), lambda i: (0, 0)),      # b2
            ],
            out_specs=pl.BlockSpec((tm_eff, C_out), lambda i: (i, 0)),
        ),
        compiler_params=pltpu.CompilerParams(
            dimension_semantics=("parallel",),
            # Raise above the 32 MiB scoped default so full-weight residency
            # plus a 512-row tile fits; 64 MiB is within physical VMEM on
            # v5e/v6e (128 MiB) and v7x (64 MiB).
            vmem_limit_bytes=64 * 1024 * 1024,
        ),
        cost_estimate=cost,
    )(x2d, w1, b1_2d, w2, b2_2d)

    if M_pad != M:
        out2d = out2d[:M]
    return out2d.reshape(B, L, C_out)


def mlp_reference(x, w1, b1, w2, b2):
    h = jnp.einsum("blc,ch->blh", x, w1) + b1
    h = 0.5 * h * (1.0 + jax.lax.erf(h / jnp.sqrt(2.0).astype(h.dtype)))
    return jnp.einsum("blh,ho->blo", h, w2) + b2


if __name__ == "__main__":
    key = jax.random.PRNGKey(0)

    def make_inputs(B, L, C_in, H, C_out, k):
        kx, k1, k2, k3, k4 = jax.random.split(k, 5)
        x = jax.random.normal(kx, (B, L, C_in), dtype=jnp.float32)
        w1 = jax.random.normal(k1, (C_in, H), dtype=jnp.float32) * 0.05
        b1 = jax.random.normal(k2, (H,), dtype=jnp.float32) * 0.05
        w2 = jax.random.normal(k3, (H, C_out), dtype=jnp.float32) * 0.05
        b2 = jax.random.normal(k4, (C_out,), dtype=jnp.float32) * 0.05
        return x, w1, b1, w2, b2

    # Case 1: small, even token count (batch=2, seq=8, in=32, hidden=64).
    x, w1, b1, w2, b2 = make_inputs(2, 8, 32, 64, 32, key)
    out = jax.block_until_ready(mlp_pallas(x, w1, b1, w2, b2))
    ref = mlp_reference(x, w1, b1, w2, b2)
    assert out.shape == (2, 8, 32)
    assert jnp.allclose(out, ref, atol=1e-5, rtol=1e-5), "mismatch (even M)"

    # Case 2: ViT-style odd token count (exercises the row-padding path).
    x, w1, b1, w2, b2 = make_inputs(2, 9, 32, 64, 32, jax.random.PRNGKey(1))
    out = jax.block_until_ready(mlp_pallas(x, w1, b1, w2, b2))
    ref = mlp_reference(x, w1, b1, w2, b2)
    assert out.shape == (2, 9, 32)
    assert jnp.allclose(out, ref, atol=1e-5, rtol=1e-5), "mismatch (padded M)"

    print("KERNEL_OK")
</pallas_src>

<mosaic_0001>
module attributes {stable_mosaic.version = 11 : i64} {
  func.func @_mlp_kernel(%arg0: i32, %arg1: memref<128x32xf32, #tpu.memory_space<vmem>>, %arg2: memref<32x64xf32, #tpu.memory_space<vmem>>, %arg3: memref<1x64xf32, #tpu.memory_space<vmem>>, %arg4: memref<64x32xf32, #tpu.memory_space<vmem>>, %arg5: memref<1x32xf32, #tpu.memory_space<vmem>>, %arg6: memref<128x32xf32, #tpu.memory_space<vmem>>) attributes {dimension_semantics = [#tpu.dimension_semantics<parallel>], iteration_bounds = array<i64: 1>, scalar_prefetch = 0 : i64, scratch_operands = 0 : i64, tpu.core_type = #tpu.core_type<tc>, window_params = [{transform_indices = @transform_0, window_bounds = array<i64: 128, 32>}, {pipeline_mode = #tpu.pipeline_mode<synchronous>, transform_indices = @transform_1, window_bounds = array<i64: 32, 64>}, {pipeline_mode = #tpu.pipeline_mode<synchronous>, transform_indices = @transform_2, window_bounds = array<i64: 1, 64>}, {pipeline_mode = #tpu.pipeline_mode<synchronous>, transform_indices = @transform_3, window_bounds = array<i64: 64, 32>}, {pipeline_mode = #tpu.pipeline_mode<synchronous>, transform_indices = @transform_4, window_bounds = array<i64: 1, 32>}, {transform_indices = @transform_5, window_bounds = array<i64: 128, 32>}]} {
    %c0 = arith.constant 0 : index
    %c0_0 = arith.constant 0 : index
    %0 = vector.load %arg1[%c0, %c0_0] : memref<128x32xf32, #tpu.memory_space<vmem>>, vector<128x32xf32>
    %c0_1 = arith.constant 0 : index
    %c0_2 = arith.constant 0 : index
    %1 = vector.load %arg2[%c0_1, %c0_2] : memref<32x64xf32, #tpu.memory_space<vmem>>, vector<32x64xf32>
    %cst = arith.constant dense<0.000000e+00> : vector<128x64xf32>
    %2 = tpu.matmul %0, %1, %cst {dimension_numbers = #tpu.dot_dimension_numbers<[1], [0], [0], [1], [0, 0, 1, 1], [], []>} : vector<128x32xf32>, vector<32x64xf32>, vector<128x64xf32> -> vector<128x64xf32>
    %c0_3 = arith.constant 0 : index
    %c0_4 = arith.constant 0 : index
    %3 = vector.load %arg3[%c0_3, %c0_4] : memref<1x64xf32, #tpu.memory_space<vmem>>, vector<1x64xf32>
    %4 = vector.broadcast %3 : vector<1x64xf32> to vector<128x64xf32>
    %5 = arith.addf %2, %4 : vector<128x64xf32>
    %cst_5 = arith.constant 5.000000e-01 : f32
    %6 = vector.broadcast %cst_5 : f32 to vector<128x64xf32>
    %7 = arith.mulf %6, %5 : vector<128x64xf32>
    %cst_6 = arith.constant 0.707106769 : f32
    %8 = vector.broadcast %cst_6 : f32 to vector<128x64xf32>
    %9 = arith.mulf %5, %8 : vector<128x64xf32>
    %10 = math.erf %9 : vector<128x64xf32>
    %cst_7 = arith.constant 1.000000e+00 : f32
    %11 = vector.broadcast %cst_7 : f32 to vector<128x64xf32>
    %12 = arith.addf %11, %10 : vector<128x64xf32>
    %13 = arith.mulf %7, %12 : vector<128x64xf32>
    %c0_8 = arith.constant 0 : index
    %c0_9 = arith.constant 0 : index
    %14 = vector.load %arg4[%c0_8, %c0_9] : memref<64x32xf32, #tpu.memory_space<vmem>>, vector<64x32xf32>
    %cst_10 = arith.constant dense<0.000000e+00> : vector<128x32xf32>
    %15 = tpu.matmul %13, %14, %cst_10 {dimension_numbers = #tpu.dot_dimension_numbers<[1], [0], [0], [1], [0, 0, 1, 1], [], []>} : vector<128x64xf32>, vector<64x32xf32>, vector<128x32xf32> -> vector<128x32xf32>
    %c0_11 = arith.constant 0 : index
    %c0_12 = arith.constant 0 : index
    %16 = vector.load %arg5[%c0_11, %c0_12] : memref<1x32xf32, #tpu.memory_space<vmem>>, vector<1x32xf32>
    %17 = vector.broadcast %16 : vector<1x32xf32> to vector<128x32xf32>
    %18 = arith.addf %15, %17 : vector<128x32xf32>
    %c0_13 = arith.constant 0 : index
    %c0_14 = arith.constant 0 : index
    %19 = vector.load %arg6[%c0_13, %c0_14] : memref<128x32xf32, #tpu.memory_space<vmem>>, vector<128x32xf32>
    tpu.vector_store %arg6[%c0_13, %c0_14], %18 {strides = array<i32>} : memref<128x32xf32, #tpu.memory_space<vmem>>, vector<128x32xf32>,
    return
  }
  func.func @transform_0(%arg0: i32) -> (i32, i32) {
    %c0_i32 = arith.constant 0 : i32
    %c0_i32_0 = arith.constant 0 : i32
    return %arg0, %c0_i32 : i32, i32
  }
  func.func @transform_1(%arg0: i32) -> (i32, i32) {
    %c0_i32 = arith.constant 0 : i32
    %c0_i32_0 = arith.constant 0 : i32
    %c0_i32_1 = arith.constant 0 : i32
    return %c0_i32, %c0_i32_0 : i32, i32
  }
  func.func @transform_2(%arg0: i32) -> (i32, i32) {
    %c0_i32 = arith.constant 0 : i32
    %c0_i32_0 = arith.constant 0 : i32
    %c0_i32_1 = arith.constant 0 : i32
    return %c0_i32, %c0_i32_0 : i32, i32
  }
  func.func @transform_3(%arg0: i32) -> (i32, i32) {
    %c0_i32 = arith.constant 0 : i32
    %c0_i32_0 = arith.constant 0 : i32
    %c0_i32_1 = arith.constant 0 : i32
    return %c0_i32, %c0_i32_0 : i32, i32
  }
  func.func @transform_4(%arg0: i32) -> (i32, i32) {
    %c0_i32 = arith.constant 0 : i32
    %c0_i32_0 = arith.constant 0 : i32
    %c0_i32_1 = arith.constant 0 : i32
    return %c0_i32, %c0_i32_0 : i32, i32
  }
  func.func @transform_5(%arg0: i32) -> (i32, i32) {
    %c0_i32 = arith.constant 0 : i32
    %c0_i32_0 = arith.constant 0 : i32
    return %arg0, %c0_i32 : i32, i32
  }
}

</mosaic_0001>

<llo_original>
// kernel: tpu_custom_call.1
$region0: #{tpu_custom_call.1}
  #allocation0 [shape = 'u32[]', space=smem, size = 0x4, offset = 0x4, fixed_abs, tag = 'smem constant byte address 0x4 - core index']
  #allocation1 [shape = 'u32[72,128]{1,0:T(1,128)}', space=vmem, size = 0x9000, scoped, tag = 'internal scratch']
  %s0 = inlined_call_operand.vmem [shape: f32[128,32], index: 0, kind: input, shape index: {}]
  %s1 = inlined_call_operand.vmem [shape: f32[32,64], index: 1, kind: input, shape index: {}]
  %s2 = inlined_call_operand.vmem [shape: f32[1,64], index: 2, kind: input, shape index: {}]
  %s3 = inlined_call_operand.vmem [shape: f32[64,32], index: 3, kind: input, shape index: {}]
  %s4 = inlined_call_operand.vmem [shape: f32[1,32], index: 4, kind: input, shape index: {}]
  %s5 = inlined_call_operand.vmem [shape: f32[128,32], index: 5, kind: output, shape index: {}]
  %s6 = sld [smem:[#allocation0]]
  $region30: #{tpu_custom_call.1} parent=0
    _
  %s8 = ssub.s32 1, %s6
  %s9 = scalar_select 0, %s8, %s6
  // Predicated region
  $region2: #{tpu_custom_call.1} parent=0 // pred_check
    _
  $region3: #{tpu_custom_call.1} parent=0 // pred_check_branch
    %11 = sbr.rel (0) target = $region5
  $region4: #{tpu_custom_call.1} parent=0 // pred_region
    _
  $region5: #{tpu_custom_call.1} parent=0 // pred_fallthru
    _
  // Predicated region
  $region6: #{tpu_custom_call.1} parent=0 // pred_check
    _
  $region7: #{tpu_custom_call.1} parent=0 // pred_check_branch
    %13 = sbr.rel (0) target = $region9
  $region8: #{tpu_custom_call.1} parent=0 // pred_region
    _
  $region9: #{tpu_custom_call.1} parent=0 // pred_fallthru
    _
  // Predicated region
  $region10: #{tpu_custom_call.1} parent=0 // pred_check
    _
  $region11: #{tpu_custom_call.1} parent=0 // pred_check_branch
    %15 = sbr.rel (0) target = $region13
  $region12: #{tpu_custom_call.1} parent=0 // pred_region
    _
  $region13: #{tpu_custom_call.1} parent=0 // pred_fallthru
    _
  // Predicated region
  $region14: #{tpu_custom_call.1} parent=0 // pred_check
    _
  $region15: #{tpu_custom_call.1} parent=0 // pred_check_branch
    %17 = sbr.rel (0) target = $region17
  $region16: #{tpu_custom_call.1} parent=0 // pred_region
    _
  $region17: #{tpu_custom_call.1} parent=0 // pred_fallthru
    _
  // Predicated region
  $region18: #{tpu_custom_call.1} parent=0 // pred_check
    _
  $region19: #{tpu_custom_call.1} parent=0 // pred_check_branch
    %19 = sbr.rel (0) target = $region21
  $region20: #{tpu_custom_call.1} parent=0 // pred_region
    _
  $region21: #{tpu_custom_call.1} parent=0 // pred_fallthru
    _
  %v20 = vld [vmem:[%s0] sm:$0xff]
  %v21 = vld [vmem:[%s0 + $0x8] sm:$0xff]
  %v22 = vld [vmem:[%s0 + $0x10] sm:$0xff]
  %v23 = vld [vmem:[%s0 + $0x18] sm:$0xff]
  %v24 = vld [vmem:[%s0 + $0x20] sm:$0xff]
  %v25 = vld [vmem:[%s0 + $0x28] sm:$0xff]
  %v26 = vld [vmem:[%s0 + $0x30] sm:$0xff]
  %v27 = vld [vmem:[%s0 + $0x38] sm:$0xff]
  %v28 = vld [vmem:[%s0 + $0x40] sm:$0xff]
  %v29 = vld [vmem:[%s0 + $0x48] sm:$0xff]
  %v30 = vld [vmem:[%s0 + $0x50] sm:$0xff]
  %v31 = vld [vmem:[%s0 + $0x58] sm:$0xff]
  %v32 = vld [vmem:[%s0 + $0x60] sm:$0xff]
  %v33 = vld [vmem:[%s0 + $0x68] sm:$0xff]
  %v34 = vld [vmem:[%s0 + $0x70] sm:$0xff]
  %v35 = vld [vmem:[%s0 + $0x78] sm:$0xff]
  %v36 = vld [vmem:[%s1] sm:$0xff]
  %v37 = vld [vmem:[%s1 + $0x8] sm:$0xff]
  %v38 = vld [vmem:[%s1 + $0x10] sm:$0xff]
  %v39 = vld [vmem:[%s1 + $0x18] sm:$0xff]
  %v40 = vld [vmem:[%s2] sm:$0x1]
  %v42 = vperm.slane %v40, 0
  %vm44 = vcmask 261120
  %v46 = vsel %vm44, %v20, 0
  %v49 = vsel %vm44, %v21, 0
  %v52 = vsel %vm44, %v22, 0
  %v55 = vsel %vm44, %v23, 0
  %v58 = vsel %vm44, %v24, 0
  %v61 = vsel %vm44, %v25, 0
  %v64 = vsel %vm44, %v26, 0
  %v67 = vsel %vm44, %v27, 0
  %v70 = vsel %vm44, %v28, 0
  %v73 = vsel %vm44, %v29, 0
  %v76 = vsel %vm44, %v30, 0
  %v79 = vsel %vm44, %v31, 0
  %v82 = vsel %vm44, %v32, 0
  %v85 = vsel %vm44, %v33, 0
  %v88 = vsel %vm44, %v34, 0
  %v91 = vsel %vm44, %v35, 0
  %93 = vmatpush.msra.mxu0 0.0
  %94 = vmatpush.msra.mxu0 0.0
  %95 = vmatpush.msra.mxu0 0.0
  %96 = vmatpush.msra.mxu0 0.0
  %97 = vmatpush.msra.mxu0 0.0
  %98 = vmatpush.msra.mxu0 0.0
  %99 = vmatpush.msra.mxu0 0.0
  %100 = vmatpush.msra.mxu0 0.0
  %101 = vmatpush.msra.mxu0 0.0
  %102 = vmatpush.msra.mxu0 0.0
  %103 = vmatpush.msra.mxu0 0.0
  %104 = vmatpush.msra.mxu0 0.0
  %105 = vmatpush.msra.mxu0 %v39
  %106 = vmatpush.msra.mxu0 %v38
  %107 = vmatpush.msra.mxu0 %v37
  %108 = vmatpush.msra.mxu0 %v36
  %109 = vmatmul.f32.gmra.mxu0 %v46
  %v110 = vpop.f32.mrf.mxu0
  %v111 = vadd.f32 %v42, %v110
  %112 = vmatmul.f32.gmra.mxu0 %v49
  %v113 = vpop.f32.mrf.mxu0
  %v114 = vadd.f32 %v42, %v113
  %115 = vmatmul.f32.gmra.mxu0 %v52
  %v116 = vpop.f32.mrf.mxu0
  %v117 = vadd.f32 %v42, %v116
  %118 = vmatmul.f32.gmra.mxu0 %v55
  %v119 = vpop.f32.mrf.mxu0
  %v120 = vadd.f32 %v42, %v119
  %121 = vmatmul.f32.gmra.mxu0 %v58
  %v122 = vpop.f32.mrf.mxu0
  %v123 = vadd.f32 %v42, %v122
  %124 = vmatmul.f32.gmra.mxu0 %v61
  %v125 = vpop.f32.mrf.mxu0
  %v126 = vadd.f32 %v42, %v125
  %127 = vmatmul.f32.gmra.mxu0 %v64
  %v128 = vpop.f32.mrf.mxu0
  %v129 = vadd.f32 %v42, %v128
  %130 = vmatmul.f32.gmra.mxu0 %v67
  %v131 = vpop.f32.mrf.mxu0
  %v132 = vadd.f32 %v42, %v131
  %133 = vmatmul.f32.gmra.mxu0 %v70
  %v134 = vpop.f32.mrf.mxu0
  %v135 = vadd.f32 %v42, %v134
  %136 = vmatmul.f32.gmra.mxu0 %v73
  %v137 = vpop.f32.mrf.mxu0
  %v138 = vadd.f32 %v42, %v137
  %139 = vmatmul.f32.gmra.mxu0 %v76
  %v140 = vpop.f32.mrf.mxu0
  %v141 = vadd.f32 %v42, %v140
  %142 = vmatmul.f32.gmra.mxu0 %v79
  %v143 = vpop.f32.mrf.mxu0
  %v144 = vadd.f32 %v42, %v143
  %145 = vmatmul.f32.gmra.mxu0 %v82
  %v146 = vpop.f32.mrf.mxu0
  %v147 = vadd.f32 %v42, %v146
  %148 = vmatmul.f32.gmra.mxu0 %v85
  %v149 = vpop.f32.mrf.mxu0
  %v150 = vadd.f32 %v42, %v149
  %151 = vmatmul.f32.gmra.mxu0 %v88
  %v152 = vpop.f32.mrf.mxu0
  %v153 = vadd.f32 %v42, %v152
  %154 = vmatmul.f32.gmra.mxu0 %v91
  %v155 = vpop.f32.mrf.mxu0
  %v156 = vadd.f32 %v42, %v155
  %157 = vdwg.mxu0
  %v158 = vmul.f32 %v111, 0.5
  %v159 = vmul.f32 %v114, 0.5
  %v160 = vmul.f32 %v117, 0.5
  %v161 = vmul.f32 %v120, 0.5
  %v162 = vmul.f32 %v123, 0.5
  %v163 = vmul.f32 %v126, 0.5
  %v164 = vmul.f32 %v129, 0.5
  %v165 = vmul.f32 %v132, 0.5
  %v166 = vmul.f32 %v135, 0.5
  %v167 = vmul.f32 %v138, 0.5
  %v168 = vmul.f32 %v141, 0.5
  %v169 = vmul.f32 %v144, 0.5
  %v170 = vmul.f32 %v147, 0.5
  %v171 = vmul.f32 %v150, 0.5
  %v172 = vmul.f32 %v153, 0.5
  %v173 = vmul.f32 %v156, 0.5
  %v174 = vmul.f32 %v111, 0.70710677
  %v175 = vmul.f32 %v114, 0.70710677
  %v176 = vmul.f32 %v117, 0.70710677
  %v177 = vmul.f32 %v120, 0.70710677
  %v178 = vmul.f32 %v123, 0.70710677
  %v179 = vmul.f32 %v126, 0.70710677
  %v180 = vmul.f32 %v129, 0.70710677
  %v181 = vmul.f32 %v132, 0.70710677
  %v182 = vmul.f32 %v135, 0.70710677
  %v183 = vmul.f32 %v138, 0.70710677
  %v184 = vmul.f32 %v141, 0.70710677
  %v185 = vmul.f32 %v144, 0.70710677
  %v186 = vmul.f32 %v147, 0.70710677
  %v187 = vmul.f32 %v150, 0.70710677
  %v188 = vmul.f32 %v153, 0.70710677
  %v189 = vmul.f32 %v156, 0.70710677
  %v190 = vmul.f32 %v174, %v174
  %v191 = vmin.f32 16.0, %v190
  %v192 = vmul.f32 %v191, 2.1237322e-06
  %v193 = vadd.f32 %v192, 0.00028619796
  %v194 = vmul.f32 %v191, %v193
  %v195 = vadd.f32 %v194, 0.0036580483
  %v196 = vmul.f32 %v191, %v195
  %v197 = vadd.f32 %v196, 0.05243302
  %v198 = vmul.f32 %v191, %v197
  %v199 = vadd.f32 %v198, 0.18741608
  %v200 = vmul.f32 %v191, %v199
  %v201 = vadd.f32 %v200, 1.1283791
  %v202 = vmul.f32 %v174, %v201
  %v203 = vmul.f32 %v191, 3.8918573e-05
  %v204 = vadd.f32 %v203, 0.001143296
  %v205 = vmul.f32 %v191, %v204
  %v206 = vadd.f32 %v205, 0.014752088
  %v207 = vmul.f32 %v191, %v206
  %v208 = vadd.f32 %v207, 0.112945676
  %v209 = vmul.f32 %v191, %v208
  %v210 = vadd.f32 %v209, 0.4994258
  %v211 = vmul.f32 %v191, %v210
  %v212 = vadd.f32 %v211, 1.0
  %v213 = vrcp.pop %v212
  %v214 = vmul.f32 %v212, %v213
  %v215 = vsub.f32 1.0, %v214
  %v216 = vmul.f32 %v213, %v215
  %v217 = vadd.f32 %v213, %v216
  %vm218 = vweird.f32 %v212
  %vm219 = vweird.f32 %v213
  %vm220 = vmor %vm218, %vm219
  %v221 = vsel %vm220, %v213, %v217
  %v222 = vand.u32 2147483647, %v212
  %vm223 = vcmp.eq.f32.partialorder %v222, 8.507059e+37
  %v224 = vand.u32 %v212, 2147483648
  %v225 = vor.u32 1.1754944e-38, %v224
  %v226 = vsel %vm223, %v225, %v221
  %v227 = vmul.f32 %v202, %v226
  %v228 = vmin.f32 %v227, 1.0
  %v229 = vmax.f32 %v228, -1.0
  %v230 = vmul.f32 %v175, %v175
  %v231 = vmin.f32 16.0, %v230
  %v232 = vmul.f32 %v231, 2.1237322e-06
  %v233 = vadd.f32 %v232, 0.00028619796
  %v234 = vmul.f32 %v231, %v233
  %v235 = vadd.f32 %v234, 0.0036580483
  %v236 = vmul.f32 %v231, %v235
  %v237 = vadd.f32 %v236, 0.05243302
  %v238 = vmul.f32 %v231, %v237
  %v239 = vadd.f32 %v238, 0.18741608
  %v240 = vmul.f32 %v231, %v239
  %v241 = vadd.f32 %v240, 1.1283791
  %v242 = vmul.f32 %v175, %v241
  %v243 = vmul.f32 %v231, 3.8918573e-05
  %v244 = vadd.f32 %v243, 0.001143296
  %v245 = vmul.f32 %v231, %v244
  %v246 = vadd.f32 %v245, 0.014752088
  %v247 = vmul.f32 %v231, %v246
  %v248 = vadd.f32 %v247, 0.112945676
  %v249 = vmul.f32 %v231, %v248
  %v250 = vadd.f32 %v249, 0.4994258
  %v251 = vmul.f32 %v231, %v250
  %v252 = vadd.f32 %v251, 1.0
  %v253 = vrcp.pop %v252
  %v254 = vmul.f32 %v252, %v253
  %v255 = vsub.f32 1.0, %v254
  %v256 = vmul.f32 %v253, %v255
  %v257 = vadd.f32 %v253, %v256
  %vm258 = vweird.f32 %v252
  %vm259 = vweird.f32 %v253
  %vm260 = vmor %vm258, %vm259
  %v261 = vsel %vm260, %v253, %v257
  %v262 = vand.u32 2147483647, %v252
  %vm263 = vcmp.eq.f32.partialorder %v262, 8.507059e+37
  %v264 = vand.u32 %v252, 2147483648
  %v265 = vor.u32 1.1754944e-38, %v264
  %v266 = vsel %vm263, %v265, %v261
  %v267 = vmul.f32 %v242, %v266
  %v268 = vmin.f32 %v267, 1.0
  %v269 = vmax.f32 %v268, -1.0
  %v270 = vmul.f32 %v176, %v176
  %v271 = vmin.f32 16.0, %v270
  %v272 = vmul.f32 %v271, 2.1237322e-06
  %v273 = vadd.f32 %v272, 0.00028619796
  %v274 = vmul.f32 %v271, %v273
  %v275 = vadd.f32 %v274, 0.0036580483
  %v276 = vmul.f32 %v271, %v275
  %v277 = vadd.f32 %v276, 0.05243302
  %v278 = vmul.f32 %v271, %v277
  %v279 = vadd.f32 %v278, 0.18741608
  %v280 = vmul.f32 %v271, %v279
  %v281 = vadd.f32 %v280, 1.1283791
  %v282 = vmul.f32 %v176, %v281
  %v283 = vmul.f32 %v271, 3.8918573e-05
  %v284 = vadd.f32 %v283, 0.001143296
  %v285 = vmul.f32 %v271, %v284
  %v286 = vadd.f32 %v285, 0.014752088
  %v287 = vmul.f32 %v271, %v286
  %v288 = vadd.f32 %v287, 0.112945676
  %v289 = vmul.f32 %v271, %v288
  %v290 = vadd.f32 %v289, 0.4994258
  %v291 = vmul.f32 %v271, %v290
  %v292 = vadd.f32 %v291, 1.0
  %v293 = vrcp.pop %v292
  %v294 = vmul.f32 %v292, %v293
  %v295 = vsub.f32 1.0, %v294
  %v296 = vmul.f32 %v293, %v295
  %v297 = vadd.f32 %v293, %v296
  %vm298 = vweird.f32 %v292
  %vm299 = vweird.f32 %v293
  %vm300 = vmor %vm298, %vm299
  %v301 = vsel %vm300, %v293, %v297
  %v302 = vand.u32 2147483647, %v292
  %vm303 = vcmp.eq.f32.partialorder %v302, 8.507059e+37
  %v304 = vand.u32 %v292, 2147483648
  %v305 = vor.u32 1.1754944e-38, %v304
  %v306 = vsel %vm303, %v305, %v301
  %v307 = vmul.f32 %v282, %v306
  %v308 = vmin.f32 %v307, 1.0
  %v309 = vmax.f32 %v308, -1.0
  %v310 = vmul.f32 %v177, %v177
  %v311 = vmin.f32 16.0, %v310
  %v312 = vmul.f32 %v311, 2.1237322e-06
  %v313 = vadd.f32 %v312, 0.00028619796
  %v314 = vmul.f32 %v311, %v313
  %v315 = vadd.f32 %v314, 0.0036580483
  %v316 = vmul.f32 %v311, %v315
  %v317 = vadd.f32 %v316, 0.05243302
  %v318 = vmul.f32 %v311, %v317
  %v319 = vadd.f32 %v318, 0.18741608
  %v320 = vmul.f32 %v311, %v319
  %v321 = vadd.f32 %v320, 1.1283791
  %v322 = vmul.f32 %v177, %v321
  %v323 = vmul.f32 %v311, 3.8918573e-05
  %v324 = vadd.f32 %v323, 0.001143296
  %v325 = vmul.f32 %v311, %v324
  %v326 = vadd.f32 %v325, 0.014752088
  %v327 = vmul.f32 %v311, %v326
  %v328 = vadd.f32 %v327, 0.112945676
  %v329 = vmul.f32 %v311, %v328
  %v330 = vadd.f32 %v329, 0.4994258
  %v331 = vmul.f32 %v311, %v330
  %v332 = vadd.f32 %v331, 1.0
  %v333 = vrcp.pop %v332
  %v334 = vmul.f32 %v332, %v333
  %v335 = vsub.f32 1.0, %v334
  %v336 = vmul.f32 %v333, %v335
  %v337 = vadd.f32 %v333, %v336
  %vm338 = vweird.f32 %v332
  %vm339 = vweird.f32 %v333
  %vm340 = vmor %vm338, %vm339
  %v341 = vsel %vm340, %v333, %v337
  %v342 = vand.u32 2147483647, %v332
  %vm343 = vcmp.eq.f32.partialorder %v342, 8.507059e+37
  %v344 = vand.u32 %v332, 2147483648
  %v345 = vor.u32 1.1754944e-38, %v344
  %v346 = vsel %vm343, %v345, %v341
  %v347 = vmul.f32 %v322, %v346
  %v348 = vmin.f32 %v347, 1.0
  %v349 = vmax.f32 %v348, -1.0
  %v350 = vmul.f32 %v178, %v178
  %v351 = vmin.f32 16.0, %v350
  %v352 = vmul.f32 %v351, 2.1237322e-06
  %v353 = vadd.f32 %v352, 0.00028619796
  %v354 = vmul.f32 %v351, %v353
  %v355 = vadd.f32 %v354, 0.0036580483
  %v356 = vmul.f32 %v351, %v355
  %v357 = vadd.f32 %v356, 0.05243302
  %v358 = vmul.f32 %v351, %v357
  %v359 = vadd.f32 %v358, 0.18741608
  %v360 = vmul.f32 %v351, %v359
  %v361 = vadd.f32 %v360, 1.1283791
  %v362 = vmul.f32 %v178, %v361
  %v363 = vmul.f32 %v351, 3.8918573e-05
  %v364 = vadd.f32 %v363, 0.001143296
  %v365 = vmul.f32 %v351, %v364
  %v366 = vadd.f32 %v365, 0.014752088
  %v367 = vmul.f32 %v351, %v366
  %v368 = vadd.f32 %v367, 0.112945676
  %v369 = vmul.f32 %v351, %v368
  %v370 = vadd.f32 %v369, 0.4994258
  %v371 = vmul.f32 %v351, %v370
  %v372 = vadd.f32 %v371, 1.0
  %v373 = vrcp.pop %v372
  %v374 = vmul.f32 %v372, %v373
  %v375 = vsub.f32 1.0, %v374
  %v376 = vmul.f32 %v373, %v375
  %v377 = vadd.f32 %v373, %v376
  %vm378 = vweird.f32 %v372
  %vm379 = vweird.f32 %v373
  %vm380 = vmor %vm378, %vm379
  %v381 = vsel %vm380, %v373, %v377
  %v382 = vand.u32 2147483647, %v372
  %vm383 = vcmp.eq.f32.partialorder %v382, 8.507059e+37
  %v384 = vand.u32 %v372, 2147483648
  %v385 = vor.u32 1.1754944e-38, %v384
  %v386 = vsel %vm383, %v385, %v381
  %v387 = vmul.f32 %v362, %v386
  %v388 = vmin.f32 %v387, 1.0
  %v389 = vmax.f32 %v388, -1.0
  %v390 = vmul.f32 %v179, %v179
  %v391 = vmin.f32 16.0, %v390
  %v392 = vmul.f32 %v391, 2.1237322e-06
  %v393 = vadd.f32 %v392, 0.00028619796
  %v394 = vmul.f32 %v391, %v393
  %v395 = vadd.f32 %v394, 0.0036580483
  %v396 = vmul.f32 %v391, %v395
  %v397 = vadd.f32 %v396, 0.05243302
  %v398 = vmul.f32 %v391, %v397
  %v399 = vadd.f32 %v398, 0.18741608
  %v400 = vmul.f32 %v391, %v399
  %v401 = vadd.f32 %v400, 1.1283791
  %v402 = vmul.f32 %v179, %v401
  %v403 = vmul.f32 %v391, 3.8918573e-05
  %v404 = vadd.f32 %v403, 0.001143296
  %v405 = vmul.f32 %v391, %v404
  %v406 = vadd.f32 %v405, 0.014752088
  %v407 = vmul.f32 %v391, %v406
  %v408 = vadd.f32 %v407, 0.112945676
  %v409 = vmul.f32 %v391, %v408
  %v410 = vadd.f32 %v409, 0.4994258
  %v411 = vmul.f32 %v391, %v410
  %v412 = vadd.f32 %v411, 1.0
  %v413 = vrcp.pop %v412
  %v414 = vmul.f32 %v412, %v413
  %v415 = vsub.f32 1.0, %v414
  %v416 = vmul.f32 %v413, %v415
  %v417 = vadd.f32 %v413, %v416
  %vm418 = vweird.f32 %v412
  %vm419 = vweird.f32 %v413
  %vm420 = vmor %vm418, %vm419
  %v421 = vsel %vm420, %v413, %v417
  %v422 = vand.u32 2147483647, %v412
  %vm423 = vcmp.eq.f32.partialorder %v422, 8.507059e+37
  %v424 = vand.u32 %v412, 2147483648
  %v425 = vor.u32 1.1754944e-38, %v424
  %v426 = vsel %vm423, %v425, %v421
  %v427 = vmul.f32 %v402, %v426
  %v428 = vmin.f32 %v427, 1.0
  %v429 = vmax.f32 %v428, -1.0
  %v430 = vmul.f32 %v180, %v180
  %v431 = vmin.f32 16.0, %v430
  %v432 = vmul.f32 %v431, 2.1237322e-06
  %v433 = vadd.f32 %v432, 0.00028619796
  %v434 = vmul.f32 %v431, %v433
  %v435 = vadd.f32 %v434, 0.0036580483
  %v436 = vmul.f32 %v431, %v435
  %v437 = vadd.f32 %v436, 0.05243302
  %v438 = vmul.f32 %v431, %v437
  %v439 = vadd.f32 %v438, 0.18741608
  %v440 = vmul.f32 %v431, %v439
  %v441 = vadd.f32 %v440, 1.1283791
  %v442 = vmul.f32 %v180, %v441
  %v443 = vmul.f32 %v431, 3.8918573e-05
  %v444 = vadd.f32 %v443, 0.001143296
  %v445 = vmul.f32 %v431, %v444
  %v446 = vadd.f32 %v445, 0.014752088
  %v447 = vmul.f32 %v431, %v446
  %v448 = vadd.f32 %v447, 0.112945676
  %v449 = vmul.f32 %v431, %v448
  %v450 = vadd.f32 %v449, 0.4994258
  %v451 = vmul.f32 %v431, %v450
  %v452 = vadd.f32 %v451, 1.0
  %v453 = vrcp.pop %v452
  %v454 = vmul.f32 %v452, %v453
  %v455 = vsub.f32 1.0, %v454
  %v456 = vmul.f32 %v453, %v455
  %v457 = vadd.f32 %v453, %v456
  %vm458 = vweird.f32 %v452
  %vm459 = vweird.f32 %v453
  %vm460 = vmor %vm458, %vm459
  %v461 = vsel %vm460, %v453, %v457
  %v462 = vand.u32 2147483647, %v452
  %vm463 = vcmp.eq.f32.partialorder %v462, 8.507059e+37
  %v464 = vand.u32 %v452, 2147483648
  %v465 = vor.u32 1.1754944e-38, %v464
  %v466 = vsel %vm463, %v465, %v461
  %v467 = vmul.f32 %v442, %v466
  %v468 = vmin.f32 %v467, 1.0
  %v469 = vmax.f32 %v468, -1.0
  %v470 = vmul.f32 %v181, %v181
  %v471 = vmin.f32 16.0, %v470
  %v472 = vmul.f32 %v471, 2.1237322e-06
  %v473 = vadd.f32 %v472, 0.00028619796
  %v474 = vmul.f32 %v471, %v473
  %v475 = vadd.f32 %v474, 0.0036580483
  %v476 = vmul.f32 %v471, %v475
  %v477 = vadd.f32 %v476, 0.05243302
  %v478 = vmul.f32 %v471, %v477
  %v479 = vadd.f32 %v478, 0.18741608
  %v480 = vmul.f32 %v471, %v479
  %v481 = vadd.f32 %v480, 1.1283791
  %v482 = vmul.f32 %v181, %v481
  %v483 = vmul.f32 %v471, 3.8918573e-05
  %v484 = vadd.f32 %v483, 0.001143296
  %v485 = vmul.f32 %v471, %v484
  %v486 = vadd.f32 %v485, 0.014752088
  %v487 = vmul.f32 %v471, %v486
  %v488 = vadd.f32 %v487, 0.112945676
  %v489 = vmul.f32 %v471, %v488
  %v490 = vadd.f32 %v489, 0.4994258
  %v491 = vmul.f32 %v471, %v490
  %v492 = vadd.f32 %v491, 1.0
  %v493 = vrcp.pop %v492
  %v494 = vmul.f32 %v492, %v493
  %v495 = vsub.f32 1.0, %v494
  %v496 = vmul.f32 %v493, %v495
  %v497 = vadd.f32 %v493, %v496
  %vm498 = vweird.f32 %v492
  %vm499 = vweird.f32 %v493
  %vm500 = vmor %vm498, %vm499
  %v501 = vsel %vm500, %v493, %v497
  %v502 = vand.u32 2147483647, %v492
  %vm503 = vcmp.eq.f32.partialorder %v502, 8.507059e+37
  %v504 = vand.u32 %v492, 2147483648
  %v505 = vor.u32 1.1754944e-38, %v504
  %v506 = vsel %vm503, %v505, %v501
  %v507 = vmul.f32 %v482, %v506
  %v508 = vmin.f32 %v507, 1.0
  %v509 = vmax.f32 %v508, -1.0
  %v510 = vmul.f32 %v182, %v182
  %v511 = vmin.f32 16.0, %v510
  %v512 = vmul.f32 %v511, 2.1237322e-06
  %v513 = vadd.f32 %v512, 0.00028619796
  %v514 = vmul.f32 %v511, %v513
  %v515 = vadd.f32 %v514, 0.0036580483
  %v516 = vmul.f32 %v511, %v515
  %v517 = vadd.f32 %v516, 0.05243302
  %v518 = vmul.f32 %v511, %v517
  %v519 = vadd.f32 %v518, 0.18741608
  %v520 = vmul.f32 %v511, %v519
  %v521 = vadd.f32 %v520, 1.1283791
  %v522 = vmul.f32 %v182, %v521
  %v523 = vmul.f32 %v511, 3.8918573e-05
  %v524 = vadd.f32 %v523, 0.001143296
  %v525 = vmul.f32 %v511, %v524
  %v526 = vadd.f32 %v525, 0.014752088
  %v527 = vmul.f32 %v511, %v526
  %v528 = vadd.f32 %v527, 0.112945676
  %v529 = vmul.f32 %v511, %v528
  %v530 = vadd.f32 %v529, 0.4994258
  %v531 = vmul.f32 %v511, %v530
  %v532 = vadd.f32 %v531, 1.0
  %v533 = vrcp.pop %v532
  %v534 = vmul.f32 %v532, %v533
  %v535 = vsub.f32 1.0, %v534
  %v536 = vmul.f32 %v533, %v535
  %v537 = vadd.f32 %v533, %v536
  %vm538 = vweird.f32 %v532
  %vm539 = vweird.f32 %v533
  %vm540 = vmor %vm538, %vm539
  %v541 = vsel %vm540, %v533, %v537
  %v542 = vand.u32 2147483647, %v532
  %vm543 = vcmp.eq.f32.partialorder %v542, 8.507059e+37
  %v544 = vand.u32 %v532, 2147483648
  %v545 = vor.u32 1.1754944e-38, %v544
  %v546 = vsel %vm543, %v545, %v541
  %v547 = vmul.f32 %v522, %v546
  %v548 = vmin.f32 %v547, 1.0
  %v549 = vmax.f32 %v548, -1.0
  %v550 = vmul.f32 %v183, %v183
  %v551 = vmin.f32 16.0, %v550
  %v552 = vmul.f32 %v551, 2.1237322e-06
  %v553 = vadd.f32 %v552, 0.00028619796
  %v554 = vmul.f32 %v551, %v553
  %v555 = vadd.f32 %v554, 0.0036580483
  %v556 = vmul.f32 %v551, %v555
  %v557 = vadd.f32 %v556, 0.05243302
  %v558 = vmul.f32 %v551, %v557
  %v559 = vadd.f32 %v558, 0.18741608
  %v560 = vmul.f32 %v551, %v559
  %v561 = vadd.f32 %v560, 1.1283791
  %v562 = vmul.f32 %v183, %v561
  %v563 = vmul.f32 %v551, 3.8918573e-05
  %v564 = vadd.f32 %v563, 0.001143296
  %v565 = vmul.f32 %v551, %v564
  %v566 = vadd.f32 %v565, 0.014752088
  %v567 = vmul.f32 %v551, %v566
  %v568 = vadd.f32 %v567, 0.112945676
  %v569 = vmul.f32 %v551, %v568
  %v570 = vadd.f32 %v569, 0.4994258
  %v571 = vmul.f32 %v551, %v570
  %v572 = vadd.f32 %v571, 1.0
  %v573 = vrcp.pop %v572
  %v574 = vmul.f32 %v572, %v573
  %v575 = vsub.f32 1.0, %v574
  %v576 = vmul.f32 %v573, %v575
  %v577 = vadd.f32 %v573, %v576
  %vm578 = vweird.f32 %v572
  %vm579 = vweird.f32 %v573
  %vm580 = vmor %vm578, %vm579
  %v581 = vsel %vm580, %v573, %v577
  %v582 = vand.u32 2147483647, %v572
  %vm583 = vcmp.eq.f32.partialorder %v582, 8.507059e+37
  %v584 = vand.u32 %v572, 2147483648
  %v585 = vor.u32 1.1754944e-38, %v584
  %v586 = vsel %vm583, %v585, %v581
  %v587 = vmul.f32 %v562, %v586
  %v588 = vmin.f32 %v587, 1.0
  %v589 = vmax.f32 %v588, -1.0
  %v590 = vmul.f32 %v184, %v184
  %v591 = vmin.f32 16.0, %v590
  %v592 = vmul.f32 %v591, 2.1237322e-06
  %v593 = vadd.f32 %v592, 0.00028619796
  %v594 = vmul.f32 %v591, %v593
  %v595 = vadd.f32 %v594, 0.0036580483
  %v596 = vmul.f32 %v591, %v595
  %v597 = vadd.f32 %v596, 0.05243302
  %v598 = vmul.f32 %v591, %v597
  %v599 = vadd.f32 %v598, 0.18741608
  %v600 = vmul.f32 %v591, %v599
  %v601 = vadd.f32 %v600, 1.1283791
  %v602 = vmul.f32 %v184, %v601
  %v603 = vmul.f32 %v591, 3.8918573e-05
  %v604 = vadd.f32 %v603, 0.001143296
  %v605 = vmul.f32 %v591, %v604
  %v606 = vadd.f32 %v605, 0.014752088
  %v607 = vmul.f32 %v591, %v606
  %v608 = vadd.f32 %v607, 0.112945676
  %v609 = vmul.f32 %v591, %v608
  %v610 = vadd.f32 %v609, 0.4994258
  %v611 = vmul.f32 %v591, %v610
  %v612 = vadd.f32 %v611, 1.0
  %v613 = vrcp.pop %v612
  %v614 = vmul.f32 %v612, %v613
  %v615 = vsub.f32 1.0, %v614
  %v616 = vmul.f32 %v613, %v615
  %v617 = vadd.f32 %v613, %v616
  %vm618 = vweird.f32 %v612
  %vm619 = vweird.f32 %v613
  %vm620 = vmor %vm618, %vm619
  %v621 = vsel %vm620, %v613, %v617
  %v622 = vand.u32 2147483647, %v612
  %vm623 = vcmp.eq.f32.partialorder %v622, 8.507059e+37
  %v624 = vand.u32 %v612, 2147483648
  %v625 = vor.u32 1.1754944e-38, %v624
  %v626 = vsel %vm623, %v625, %v621
  %v627 = vmul.f32 %v602, %v626
  %v628 = vmin.f32 %v627, 1.0
  %v629 = vmax.f32 %v628, -1.0
  %v630 = vmul.f32 %v185, %v185
  %v631 = vmin.f32 16.0, %v630
  %v632 = vmul.f32 %v631, 2.1237322e-06
  %v633 = vadd.f32 %v632, 0.00028619796
  %v634 = vmul.f32 %v631, %v633
  %v635 = vadd.f32 %v634, 0.0036580483
  %v636 = vmul.f32 %v631, %v635
  %v637 = vadd.f32 %v636, 0.05243302
  %v638 = vmul.f32 %v631, %v637
  %v639 = vadd.f32 %v638, 0.18741608
  %v640 = vmul.f32 %v631, %v639
  %v641 = vadd.f32 %v640, 1.1283791
  %v642 = vmul.f32 %v185, %v641
  %v643 = vmul.f32 %v631, 3.8918573e-05
  %v644 = vadd.f32 %v643, 0.001143296
  %v645 = vmul.f32 %v631, %v644
  %v646 = vadd.f32 %v645, 0.014752088
  %v647 = vmul.f32 %v631, %v646
  %v648 = vadd.f32 %v647, 0.112945676
  %v649 = vmul.f32 %v631, %v648
  %v650 = vadd.f32 %v649, 0.4994258
  %v651 = vmul.f32 %v631, %v650
  %v652 = vadd.f32 %v651, 1.0
  %v653 = vrcp.pop %v652
  %v654 = vmul.f32 %v652, %v653
  %v655 = vsub.f32 1.0, %v654
  %v656 = vmul.f32 %v653, %v655
  %v657 = vadd.f32 %v653, %v656
  %vm658 = vweird.f32 %v652
  %vm659 = vweird.f32 %v653
  %vm660 = vmor %vm658, %vm659
  %v661 = vsel %vm660, %v653, %v657
  %v662 = vand.u32 2147483647, %v652
  %vm663 = vcmp.eq.f32.partialorder %v662, 8.507059e+37
  %v664 = vand.u32 %v652, 2147483648
  %v665 = vor.u32 1.1754944e-38, %v664
  %v666 = vsel %vm663, %v665, %v661
  %v667 = vmul.f32 %v642, %v666
  %v668 = vmin.f32 %v667, 1.0
  %v669 = vmax.f32 %v668, -1.0
  %v670 = vmul.f32 %v186, %v186
  %v671 = vmin.f32 16.0, %v670
  %v672 = vmul.f32 %v671, 2.1237322e-06
  %v673 = vadd.f32 %v672, 0.00028619796
  %v674 = vmul.f32 %v671, %v673
  %v675 = vadd.f32 %v674, 0.0036580483
  %v676 = vmul.f32 %v671, %v675
  %v677 = vadd.f32 %v676, 0.05243302
  %v678 = vmul.f32 %v671, %v677
  %v679 = vadd.f32 %v678, 0.18741608
  %v680 = vmul.f32 %v671, %v679
  %v681 = vadd.f32 %v680, 1.1283791
  %v682 = vmul.f32 %v186, %v681
  %v683 = vmul.f32 %v671, 3.8918573e-05
  %v684 = vadd.f32 %v683, 0.001143296
  %v685 = vmul.f32 %v671, %v684
  %v686 = vadd.f32 %v685, 0.014752088
  %v687 = vmul.f32 %v671, %v686
  %v688 = vadd.f32 %v687, 0.112945676
  %v689 = vmul.f32 %v671, %v688
  %v690 = vadd.f32 %v689, 0.4994258
  %v691 = vmul.f32 %v671, %v690
  %v692 = vadd.f32 %v691, 1.0
  %v693 = vrcp.pop %v692
  %v694 = vmul.f32 %v692, %v693
  %v695 = vsub.f32 1.0, %v694
  %v696 = vmul.f32 %v693, %v695
  %v697 = vadd.f32 %v693, %v696
  %vm698 = vweird.f32 %v692
  %vm699 = vweird.f32 %v693
  %vm700 = vmor %vm698, %vm699
  %v701 = vsel %vm700, %v693, %v697
  %v702 = vand.u32 2147483647, %v692
  %vm703 = vcmp.eq.f32.partialorder %v702, 8.507059e+37
  %v704 = vand.u32 %v692, 2147483648
  %v705 = vor.u32 1.1754944e-38, %v704
  %v706 = vsel %vm703, %v705, %v701
  %v707 = vmul.f32 %v682, %v706
  %v708 = vmin.f32 %v707, 1.0
  %v709 = vmax.f32 %v708, -1.0
  %v710 = vmul.f32 %v187, %v187
  %v711 = vmin.f32 16.0, %v710
  %v712 = vmul.f32 %v711, 2.1237322e-06
  %v713 = vadd.f32 %v712, 0.00028619796
  %v714 = vmul.f32 %v711, %v713
  %v715 = vadd.f32 %v714, 0.0036580483
  %v716 = vmul.f32 %v711, %v715
  %v717 = vadd.f32 %v716, 0.05243302
  %v718 = vmul.f32 %v711, %v717
  %v719 = vadd.f32 %v718, 0.18741608
  %v720 = vmul.f32 %v711, %v719
  %v721 = vadd.f32 %v720, 1.1283791
  %v722 = vmul.f32 %v187, %v721
  %v723 = vmul.f32 %v711, 3.8918573e-05
  %v724 = vadd.f32 %v723, 0.001143296
  %v725 = vmul.f32 %v711, %v724
  %v726 = vadd.f32 %v725, 0.014752088
  %v727 = vmul.f32 %v711, %v726
  %v728 = vadd.f32 %v727, 0.112945676
  %v729 = vmul.f32 %v711, %v728
  %v730 = vadd.f32 %v729, 0.4994258
  %v731 = vmul.f32 %v711, %v730
  %v732 = vadd.f32 %v731, 1.0
  %v733 = vrcp.pop %v732
  %v734 = vmul.f32 %v732, %v733
  %v735 = vsub.f32 1.0, %v734
  %v736 = vmul.f32 %v733, %v735
  %v737 = vadd.f32 %v733, %v736
  %vm738 = vweird.f32 %v732
  %vm739 = vweird.f32 %v733
  %vm740 = vmor %vm738, %vm739
  %v741 = vsel %vm740, %v733, %v737
  %v742 = vand.u32 2147483647, %v732
  %vm743 = vcmp.eq.f32.partialorder %v742, 8.507059e+37
  %v744 = vand.u32 %v732, 2147483648
  %v745 = vor.u32 1.1754944e-38, %v744
  %v746 = vsel %vm743, %v745, %v741
  %v747 = vmul.f32 %v722, %v746
  %v748 = vmin.f32 %v747, 1.0
  %v749 = vmax.f32 %v748, -1.0
  %v750 = vmul.f32 %v188, %v188
  %v751 = vmin.f32 16.0, %v750
  %v752 = vmul.f32 %v751, 2.1237322e-06
  %v753 = vadd.f32 %v752, 0.00028619796
  %v754 = vmul.f32 %v751, %v753
  %v755 = vadd.f32 %v754, 0.0036580483
  %v756 = vmul.f32 %v751, %v755
  %v757 = vadd.f32 %v756, 0.05243302
  %v758 = vmul.f32 %v751, %v757
  %v759 = vadd.f32 %v758, 0.18741608
  %v760 = vmul.f32 %v751, %v759
  %v761 = vadd.f32 %v760, 1.1283791
  %v762 = vmul.f32 %v188, %v761
  %v763 = vmul.f32 %v751, 3.8918573e-05
  %v764 = vadd.f32 %v763, 0.001143296
  %v765 = vmul.f32 %v751, %v764
  %v766 = vadd.f32 %v765, 0.014752088
  %v767 = vmul.f32 %v751, %v766
  %v768 = vadd.f32 %v767, 0.112945676
  %v769 = vmul.f32 %v751, %v768
  %v770 = vadd.f32 %v769, 0.4994258
  %v771 = vmul.f32 %v751, %v770
  %v772 = vadd.f32 %v771, 1.0
  %v773 = vrcp.pop %v772
  %v774 = vmul.f32 %v772, %v773
  %v775 = vsub.f32 1.0, %v774
  %v776 = vmul.f32 %v773, %v775
  %v777 = vadd.f32 %v773, %v776
  %vm778 = vweird.f32 %v772
  %vm779 = vweird.f32 %v773
  %vm780 = vmor %vm778, %vm779
  %v781 = vsel %vm780, %v773, %v777
  %v782 = vand.u32 2147483647, %v772
  %vm783 = vcmp.eq.f32.partialorder %v782, 8.507059e+37
  %v784 = vand.u32 %v772, 2147483648
  %v785 = vor.u32 1.1754944e-38, %v784
  %v786 = vsel %vm783, %v785, %v781
  %v787 = vmul.f32 %v762, %v786
  %v788 = vmin.f32 %v787, 1.0
  %v789 = vmax.f32 %v788, -1.0
  %v790 = vmul.f32 %v189, %v189
  %v791 = vmin.f32 16.0, %v790
  %v792 = vmul.f32 %v791, 2.1237322e-06
  %v793 = vadd.f32 %v792, 0.00028619796
  %v794 = vmul.f32 %v791, %v793
  %v795 = vadd.f32 %v794, 0.0036580483
  %v796 = vmul.f32 %v791, %v795
  %v797 = vadd.f32 %v796, 0.05243302
  %v798 = vmul.f32 %v791, %v797
  %v799 = vadd.f32 %v798, 0.18741608
  %v800 = vmul.f32 %v791, %v799
  %v801 = vadd.f32 %v800, 1.1283791
  %v802 = vmul.f32 %v189, %v801
  %v803 = vmul.f32 %v791, 3.8918573e-05
  %v804 = vadd.f32 %v803, 0.001143296
  %v805 = vmul.f32 %v791, %v804
  %v806 = vadd.f32 %v805, 0.014752088
  %v807 = vmul.f32 %v791, %v806
  %v808 = vadd.f32 %v807, 0.112945676
  %v809 = vmul.f32 %v791, %v808
  %v810 = vadd.f32 %v809, 0.4994258
  %v811 = vmul.f32 %v791, %v810
  %v812 = vadd.f32 %v811, 1.0
  %v813 = vrcp.pop %v812
  %v814 = vmul.f32 %v812, %v813
  %v815 = vsub.f32 1.0, %v814
  %v816 = vmul.f32 %v813, %v815
  %v817 = vadd.f32 %v813, %v816
  %vm818 = vweird.f32 %v812
  %vm819 = vweird.f32 %v813
  %vm820 = vmor %vm818, %vm819
  %v821 = vsel %vm820, %v813, %v817
  %v822 = vand.u32 2147483647, %v812
  %vm823 = vcmp.eq.f32.partialorder %v822, 8.507059e+37
  %v824 = vand.u32 %v812, 2147483648
  %v825 = vor.u32 1.1754944e-38, %v824
  %v826 = vsel %vm823, %v825, %v821
  %v827 = vmul.f32 %v802, %v826
  %v828 = vmin.f32 %v827, 1.0
  %v829 = vmax.f32 %v828, -1.0
  %v830 = vadd.f32 %v229, 1.0
  %v831 = vadd.f32 %v269, 1.0
  %v832 = vadd.f32 %v309, 1.0
  %v833 = vadd.f32 %v349, 1.0
  %v834 = vadd.f32 %v389, 1.0
  %v835 = vadd.f32 %v429, 1.0
  %v836 = vadd.f32 %v469, 1.0
  %v837 = vadd.f32 %v509, 1.0
  %v838 = vadd.f32 %v549, 1.0
  %v839 = vadd.f32 %v589, 1.0
  %v840 = vadd.f32 %v629, 1.0
  %v841 = vadd.f32 %v669, 1.0
  %v842 = vadd.f32 %v709, 1.0
  %v843 = vadd.f32 %v749, 1.0
  %v844 = vadd.f32 %v789, 1.0
  %v845 = vadd.f32 %v829, 1.0
  %v846 = vmul.f32 %v158, %v830
  %v847 = vmul.f32 %v159, %v831
  %v848 = vmul.f32 %v160, %v832
  %v849 = vmul.f32 %v161, %v833
  %v850 = vmul.f32 %v162, %v834
  %v851 = vmul.f32 %v163, %v835
  %v852 = vmul.f32 %v164, %v836
  %v853 = vmul.f32 %v165, %v837
  %v854 = vmul.f32 %v166, %v838
  %v855 = vmul.f32 %v167, %v839
  %v856 = vmul.f32 %v168, %v840
  %v857 = vmul.f32 %v169, %v841
  %v858 = vmul.f32 %v170, %v842
  %v859 = vmul.f32 %v171, %v843
  %v860 = vmul.f32 %v172, %v844
  %v861 = vmul.f32 %v173, %v845
  %v862 = vld [vmem:[%s3] sm:$0xff]
  %v863 = vld [vmem:[%s3 + $0x8] sm:$0xff]
  %v864 = vld [vmem:[%s3 + $0x10] sm:$0xff]
  %v865 = vld [vmem:[%s3 + $0x18] sm:$0xff]
  %v866 = vld [vmem:[%s3 + $0x20] sm:$0xff]
  %v867 = vld [vmem:[%s3 + $0x28] sm:$0xff]
  %v868 = vld [vmem:[%s3 + $0x30] sm:$0xff]
  %v869 = vld [vmem:[%s3 + $0x38] sm:$0xff]
  %v870 = vld [vmem:[%s4] sm:$0x1]
  %v872 = vperm.slane %v870, 0
  %vm874 = vcmask 523264
  %v876 = vsel %vm874, %v846, 0
  %v879 = vsel %vm874, %v847, 0
  %v882 = vsel %vm874, %v848, 0
  %v885 = vsel %vm874, %v849, 0
  %v888 = vsel %vm874, %v850, 0
  %v891 = vsel %vm874, %v851, 0
  %v894 = vsel %vm874, %v852, 0
  %v897 = vsel %vm874, %v853, 0
  %v900 = vsel %vm874, %v854, 0
  %v903 = vsel %vm874, %v855, 0
  %v906 = vsel %vm874, %v856, 0
  %v909 = vsel %vm874, %v857, 0
  %v912 = vsel %vm874, %v858, 0
  %v915 = vsel %vm874, %v859, 0
  %v918 = vsel %vm874, %v860, 0
  %v921 = vsel %vm874, %v861, 0
  %923 = vmatpush.msra.mxu0 0.0
  %924 = vmatpush.msra.mxu0 0.0
  %925 = vmatpush.msra.mxu0 0.0
  %926 = vmatpush.msra.mxu0 0.0
  %927 = vmatpush.msra.mxu0 0.0
  %928 = vmatpush.msra.mxu0 0.0
  %929 = vmatpush.msra.mxu0 0.0
  %930 = vmatpush.msra.mxu0 0.0
  %931 = vmatpush.msra.mxu0 %v869
  %932 = vmatpush.msra.mxu0 %v868
  %933 = vmatpush.msra.mxu0 %v867
  %934 = vmatpush.msra.mxu0 %v866
  %935 = vmatpush.msra.mxu0 %v865
  %936 = vmatpush.msra.mxu0 %v864
  %937 = vmatpush.msra.mxu0 %v863
  %938 = vmatpush.msra.mxu0 %v862
  %939 = vmatmul.f32.gmra.mxu0 %v876
  %v940 = vpop.f32.mrf.mxu0
  %v941 = vadd.f32 %v872, %v940
  %942 = vmatmul.f32.gmra.mxu0 %v879
  %v943 = vpop.f32.mrf.mxu0
  %v944 = vadd.f32 %v872, %v943
  %945 = vmatmul.f32.gmra.mxu0 %v882
  %v946 = vpop.f32.mrf.mxu0
  %v947 = vadd.f32 %v872, %v946
  %948 = vmatmul.f32.gmra.mxu0 %v885
  %v949 = vpop.f32.mrf.mxu0
  %v950 = vadd.f32 %v872, %v949
  %951 = vmatmul.f32.gmra.mxu0 %v888
  %v952 = vpop.f32.mrf.mxu0
  %v953 = vadd.f32 %v872, %v952
  %954 = vmatmul.f32.gmra.mxu0 %v891
  %v955 = vpop.f32.mrf.mxu0
  %v956 = vadd.f32 %v872, %v955
  %957 = vmatmul.f32.gmra.mxu0 %v894
  %v958 = vpop.f32.mrf.mxu0
  %v959 = vadd.f32 %v872, %v958
  %960 = vmatmul.f32.gmra.mxu0 %v897
  %v961 = vpop.f32.mrf.mxu0
  %v962 = vadd.f32 %v872, %v961
  %963 = vmatmul.f32.gmra.mxu0 %v900
  %v964 = vpop.f32.mrf.mxu0
  %v965 = vadd.f32 %v872, %v964
  %966 = vmatmul.f32.gmra.mxu0 %v903
  %v967 = vpop.f32.mrf.mxu0
  %v968 = vadd.f32 %v872, %v967
  %969 = vmatmul.f32.gmra.mxu0 %v906
  %v970 = vpop.f32.mrf.mxu0
  %v971 = vadd.f32 %v872, %v970
  %972 = vmatmul.f32.gmra.mxu0 %v909
  %v973 = vpop.f32.mrf.mxu0
  %v974 = vadd.f32 %v872, %v973
  %975 = vmatmul.f32.gmra.mxu0 %v912
  %v976 = vpop.f32.mrf.mxu0
  %v977 = vadd.f32 %v872, %v976
  %978 = vmatmul.f32.gmra.mxu0 %v915
  %v979 = vpop.f32.mrf.mxu0
  %v980 = vadd.f32 %v872, %v979
  %981 = vmatmul.f32.gmra.mxu0 %v918
  %v982 = vpop.f32.mrf.mxu0
  %v983 = vadd.f32 %v872, %v982
  %984 = vmatmul.f32.gmra.mxu0 %v921
  %v985 = vpop.f32.mrf.mxu0
  %v986 = vadd.f32 %v872, %v985
  %987 = vdwg.mxu0
  %988 = vst.msk [vmem:[%s5] sm:$0xff] %vm44, %v941
  %989 = vst.msk [vmem:[%s5 + $0x8] sm:$0xff] %vm44, %v944
  %990 = vst.msk [vmem:[%s5 + $0x10] sm:$0xff] %vm44, %v947
  %991 = vst.msk [vmem:[%s5 + $0x18] sm:$0xff] %vm44, %v950
  %992 = vst.msk [vmem:[%s5 + $0x20] sm:$0xff] %vm44, %v953
  %993 = vst.msk [vmem:[%s5 + $0x28] sm:$0xff] %vm44, %v956
  %994 = vst.msk [vmem:[%s5 + $0x30] sm:$0xff] %vm44, %v959
  %995 = vst.msk [vmem:[%s5 + $0x38] sm:$0xff] %vm44, %v962
  %996 = vst.msk [vmem:[%s5 + $0x40] sm:$0xff] %vm44, %v965
  %997 = vst.msk [vmem:[%s5 + $0x48] sm:$0xff] %vm44, %v968
  %998 = vst.msk [vmem:[%s5 + $0x50] sm:$0xff] %vm44, %v971
  %999 = vst.msk [vmem:[%s5 + $0x58] sm:$0xff] %vm44, %v974
  %1000 = vst.msk [vmem:[%s5 + $0x60] sm:$0xff] %vm44, %v977
  %1001 = vst.msk [vmem:[%s5 + $0x68] sm:$0xff] %vm44, %v980
  %1002 = vst.msk [vmem:[%s5 + $0x70] sm:$0xff] %vm44, %v983
  %1003 = vst.msk [vmem:[%s5 + $0x78] sm:$0xff] %vm44, %v986
  // Predicated region
  $region22: #{tpu_custom_call.1} parent=0 // pred_check
    _
  $region23: #{tpu_custom_call.1} parent=0 // pred_check_branch
    %1005 = sbr.rel (0) target = $region25
  $region24: #{tpu_custom_call.1} parent=0 // pred_region
    _
  $region25: #{tpu_custom_call.1} parent=0 // pred_fallthru
    _
  // Predicated region
  $region26: #{tpu_custom_call.1} parent=0 // pred_check
    _
  $region27: #{tpu_custom_call.1} parent=0 // pred_check_branch
    %1007 = sbr.rel (0) target = $region29
  $region28: #{tpu_custom_call.1} parent=0 // pred_region
    _
  $region29: #{tpu_custom_call.1} parent=0 // pred_fallthru
    _

</llo_original>
